<compile_context>
chip_gen: v6e
topology: v6e:2x2x1
jax: 0.10.0
libtpu: 0.0.40
codegen_flags: <defaults>
</compile_context>

<pallas_src>
import jax
import jax.numpy as jnp
from jax.experimental import pallas as pl
from jax.experimental.pallas import tpu as pltpu

LANE = 128
SUBLANE = 8
H1, H2 = 512, 256


def _round_up(x, m):
    return (x + m - 1) // m * m


# --------------------------------------------------------------------------- #
# Kernels
# --------------------------------------------------------------------------- #
def _layers_2_3(h1_f32, b1, w2_ref, b2_ref, w3_ref, b3_ref, o_ref):
    """bias + ReLU on the layer-1 accumulator, then layers 2 and 3 on the MXU."""
    h1 = jnp.maximum(h1_f32 + b1, 0.0).astype(jnp.bfloat16)
    h2 = jnp.dot(h1, w2_ref[...], preferred_element_type=jnp.float32)
    h2 = jnp.maximum(h2 + b2_ref[...], 0.0).astype(jnp.bfloat16)
    y = jnp.dot(h2, w3_ref[...], preferred_element_type=jnp.float32) + b3_ref[...]
    o_ref[...] = y.astype(o_ref.dtype)


def mlp_kernel(x_ref, w1_ref, b1_ref, w2_ref, b2_ref, w3_ref, b3_ref, o_ref):
    """Fully fused path: whole input_dim contraction in one grid step."""
    x = x_ref[...].astype(jnp.bfloat16)
    h1 = jnp.dot(x, w1_ref[...], preferred_element_type=jnp.float32)
    _layers_2_3(h1, b1_ref[...], w2_ref, b2_ref, w3_ref, b3_ref, o_ref)


def mlp_kernel_ksplit(x_ref, w1_ref, b1_ref, w2_ref, b2_ref, w3_ref, b3_ref,
                      o_ref, acc_ref):
    """Wide-input path: layer-1 contraction streamed over an 'arbitrary' K axis."""
    k = pl.program_id(1)

    @pl.when(k == 0)
    def _():
        acc_ref[...] = jnp.zeros_like(acc_ref)

    x = x_ref[...].astype(jnp.bfloat16)
    acc_ref[...] += jnp.dot(x, w1_ref[...], preferred_element_type=jnp.float32)

    @pl.when(k == pl.num_programs(1) - 1)
    def _():
        _layers_2_3(acc_ref[...], b1_ref[...], w2_ref, b2_ref, w3_ref, b3_ref, o_ref)


# --------------------------------------------------------------------------- #
# Tiling / VMEM budgeting
# --------------------------------------------------------------------------- #
def _vmem_budget_bytes():
    try:
        cap = int(pltpu.get_tpu_info().vmem_capacity_bytes)
    except Exception:
        cap = 64 << 20  # conservative fallback: v7x per-TensorCore VMEM
    # Leave headroom for compiler-internal scratch / semaphores / bookkeeping
    # (never request the full physical VMEM, esp. on v7x's 64 MiB).
    return max(cap - (8 << 20), 16 << 20)


def _footprint_bytes(tb, tk, split_k, input_dim, out_pad, x_bytes, out_bytes):
    rest_w = (H1 * H2 + H2 * out_pad) * 2 + (H1 + H2 + out_pad) * 4
    slack = 4 << 20
    if not split_k:
        return (2 * tb * input_dim * x_bytes        # x tile, double-buffered
                + 2 * tb * out_pad * out_bytes      # out tile, double-buffered
                + input_dim * H1 * 2 + rest_w       # weights/biases, single-buffered
                + tb * (H1 + H2) * 4                # live f32 h1/h2 values
                + slack)
    return (2 * tb * tk * x_bytes                   # x K-tile, double-buffered
            + 2 * tk * H1 * 2                       # w1 K-tile, double-buffered
            + 2 * tb * out_pad * out_bytes
            + rest_w
            + tb * H1 * 4                           # f32 layer-1 accumulator scratch
            + tb * H2 * 4                           # live f32 h2 values
            + slack)


def _pick_batch_tile(B):
    if B <= 128:
        return max(SUBLANE, _round_up(B, SUBLANE))
    # Largest tile that still leaves >= 2 steps on the "parallel" grid axis
    # (keeps both v7x TensorCores busy, amortizes the ~0.35us per-step overhead).
    for tb in (1024, 512, 256, 128):
        if B >= 2 * tb:
            return tb
    return 128


def _choose_tiling(B, input_dim, out_pad, x_bytes, out_bytes, batch_tile):
    budget = _vmem_budget_bytes()
    tb = _pick_batch_tile(B) if batch_tile is None else max(SUBLANE, _round_up(batch_tile, SUBLANE))

    # Shrink the batch tile (never below 128) until the fully fused path fits.
    while tb > 128 and _footprint_bytes(tb, input_dim, False, input_dim, out_pad,
                                        x_bytes, out_bytes) > budget:
        tb //= 2

    fused = _footprint_bytes(tb, input_dim, False, input_dim, out_pad, x_bytes, out_bytes)
    if fused <= budget:
        return tb, input_dim, 1, min(max(fused, 16 << 20), budget)

    # Wide input_dim: stream the layer-1 contraction over a second grid axis.
    if input_dim % LANE == 0 and input_dim > LANE:
        divisors = [d for d in range(LANE, input_dim, LANE) if input_dim % d == 0]
        tk = None
        for d in sorted(divisors, reverse=True):
            if _footprint_bytes(tb, d, True, input_dim, out_pad, x_bytes, out_bytes) <= budget:
                tk = d
                break
        if tk is None and divisors:
            tk = min(divisors)
        if tk is not None:
            fp = _footprint_bytes(tb, tk, True, input_dim, out_pad, x_bytes, out_bytes)
            return tb, tk, input_dim // tk, min(max(fp, 16 << 20), budget)

    # TODO(synk): huge input_dim that is not a multiple of 128 would need a
    # zero-padded w1 / masked K tail; fall back to the fused path best-effort.
    return tb, input_dim, 1, min(max(fused, 16 << 20), budget)


# --------------------------------------------------------------------------- #
# Parameter preparation (one-time, hoisted out of the per-call hot path)
# --------------------------------------------------------------------------- #
def prepare_params(w1, b1, w2, b2, w3, b3):
    """Accepts PyTorch nn.Linear layout (W: (out,in), b: (out,)).

    Transposes to (in,out), casts weights to bf16 once, and lane-pads the final
    layer to a multiple of 128 so output stores are full-lane (unmasked vst)."""
    output_dim = w3.shape[0]
    out_pad = _round_up(output_dim, LANE)
    pad = out_pad - output_dim
    return {
        "w1": jnp.asarray(w1, jnp.bfloat16).T,
        "b1": jnp.asarray(b1, jnp.float32).reshape(1, -1),
        "w2": jnp.asarray(w2, jnp.bfloat16).T,
        "b2": jnp.asarray(b2, jnp.float32).reshape(1, -1),
        "w3": jnp.pad(jnp.asarray(w3, jnp.bfloat16).T, ((0, 0), (0, pad))),
        "b3": jnp.pad(jnp.asarray(b3, jnp.float32).reshape(1, -1), ((0, 0), (0, pad))),
        "output_dim": output_dim,
    }


def init_params(key, input_dim, output_dim):
    """Deterministic synthetic init mirroring nn.Linear's default uniform init."""
    dims = [(H1, input_dim), (H2, H1), (output_dim, H2)]
    raw = []
    for fan_out, fan_in in dims:
        key, kw, kb = jax.random.split(key, 3)
        bound = 1.0 / jnp.sqrt(fan_in)
        raw.append(jax.random.uniform(kw, (fan_out, fan_in), jnp.float32, -bound, bound))
        raw.append(jax.random.uniform(kb, (fan_out,), jnp.float32, -bound, bound))
    return prepare_params(*raw)


# --------------------------------------------------------------------------- #
# Forward pass
# --------------------------------------------------------------------------- #
def feature_align_net(x, params, *, batch_tile=None, return_padded=False):
    """FeatureAlignNet forward.

    x: [B, input_dim], float32 or bfloat16 (pass bf16 from upstream to halve x
       HBM traffic -- no wrapper-side astype is added here).
    params: output of prepare_params() / init_params().
    return_padded: return the [B, out_pad] lane-padded buffer (skips the
       trailing slice copy for padding-tolerant consumers)."""
    B, input_dim = x.shape
    w1, b1 = params["w1"], params["b1"]
    w2, b2 = params["w2"], params["b2"]
    w3, b3 = params["w3"], params["b3"]
    output_dim = params["output_dim"]
    out_pad = w3.shape[1]
    assert w1.shape[0] == input_dim

    out_dtype = x.dtype
    x_bytes = jnp.dtype(x.dtype).itemsize
    out_bytes = jnp.dtype(out_dtype).itemsize

    tb, tk, n_k, vmem_limit = _choose_tiling(B, input_dim, out_pad, x_bytes,
                                             out_bytes, batch_tile)
    n_b = pl.cdiv(B, tb)  # no batch padding: tail-block garbage rows are row-wise + discarded

    flops = 2 * B * (input_dim * H1 + H1 * H2 + H2 * out_pad)
    bytes_accessed = (B * input_dim * x_bytes + B * out_pad * out_bytes
                      + (input_dim * H1 + H1 * H2 + H2 * out_pad) * 2
                      + (H1 + H2 + out_pad) * 4)
    cost = pl.CostEstimate(flops=flops, transcendentals=0,
                           bytes_accessed=int(bytes_accessed))

    if n_k == 1:
        def const(shape):
            zeros = (0,) * len(shape)
            # Same block every grid step -> single buffer (saves VMEM).
            return pl.BlockSpec(shape, lambda i: zeros, pipeline_mode=pl.Buffered(1))

        grid_spec = pltpu.PrefetchScalarGridSpec(
            num_scalar_prefetch=0,
            grid=(n_b,),
            in_specs=[
                pl.BlockSpec((tb, input_dim), lambda i: (i, 0)),   # x tile (pipelined)
                const(w1.shape), const(b1.shape),
                const(w2.shape), const(b2.shape),
                const(w3.shape), const(b3.shape),
            ],
            out_specs=pl.BlockSpec((tb, out_pad), lambda i: (i, 0)),
        )
        kernel = mlp_kernel
        semantics = ("parallel",)
    else:
        def const(shape):
            zeros = (0,) * len(shape)
            return pl.BlockSpec(shape, lambda i, k: zeros, pipeline_mode=pl.Buffered(1))

        grid_spec = pltpu.PrefetchScalarGridSpec(
            num_scalar_prefetch=0,
            grid=(n_b, n_k),
            in_specs=[
                pl.BlockSpec((tb, tk), lambda i, k: (i, k)),       # x K-tile
                pl.BlockSpec((tk, H1), lambda i, k: (k, 0)),       # w1 K-tile (pipelined)
                const(b1.shape),
                const(w2.shape), const(b2.shape),
                const(w3.shape), const(b3.shape),
            ],
            out_specs=pl.BlockSpec((tb, out_pad), lambda i, k: (i, 0)),
            scratch_shapes=[pltpu.VMEM((tb, H1), jnp.float32)],
        )
        kernel = mlp_kernel_ksplit
        semantics = ("parallel", "arbitrary")

    out = pl.pallas_call(
        kernel,
        out_shape=jax.ShapeDtypeStruct((B, out_pad), out_dtype),
        grid_spec=grid_spec,
        compiler_params=pltpu.CompilerParams(
            dimension_semantics=semantics,
            vmem_limit_bytes=int(vmem_limit),
        ),
        cost_estimate=cost,
    )(x, w1, b1, w2, b2, w3, b3)

    if return_padded or out_pad == output_dim:
        return out
    return out[:, :output_dim]


def reference_forward(x, params):
    # Pure-JAX reference matching the kernel arithmetic exactly
    # (bf16 matmul inputs, f32 MXU accumulation, f32 bias + ReLU).
    h1 = jnp.dot(x.astype(jnp.bfloat16), params["w1"], preferred_element_type=jnp.float32)
    h1 = jnp.maximum(h1 + params["b1"], 0.0)
    h2 = jnp.dot(h1.astype(jnp.bfloat16), params["w2"], preferred_element_type=jnp.float32)
    h2 = jnp.maximum(h2 + params["b2"], 0.0)
    y = jnp.dot(h2.astype(jnp.bfloat16), params["w3"], preferred_element_type=jnp.float32) + params["b3"]
    return y[:, :params["output_dim"]]


if __name__ == "__main__":
    input_dim, output_dim, batch = 128, 64, 8

    key = jax.random.PRNGKey(0)
    key, kx = jax.random.split(key)
    x = jax.random.normal(kx, (batch, input_dim), jnp.float32)
    params = init_params(key, input_dim, output_dim)

    out = jax.block_until_ready(feature_align_net(x, params))
    ref = reference_forward(x, params)

    assert out.shape == (batch, output_dim), out.shape
    assert jnp.allclose(out, ref, atol=1e-2, rtol=1e-2)

    print("KERNEL_OK")
</pallas_src>

<mosaic_0001>
module attributes {stable_mosaic.version = 11 : i64} {
  func.func @mlp_kernel(%arg0: i32, %arg1: memref<8x128xf32, #tpu.memory_space<vmem>>, %arg2: memref<128x512xbf16, #tpu.memory_space<vmem>>, %arg3: memref<1x512xf32, #tpu.memory_space<vmem>>, %arg4: memref<512x256xbf16, #tpu.memory_space<vmem>>, %arg5: memref<1x256xf32, #tpu.memory_space<vmem>>, %arg6: memref<256x128xbf16, #tpu.memory_space<vmem>>, %arg7: memref<1x128xf32, #tpu.memory_space<vmem>>, %arg8: memref<8x128xf32, #tpu.memory_space<vmem>>) attributes {dimension_semantics = [#tpu.dimension_semantics<parallel>], iteration_bounds = array<i64: 1>, scalar_prefetch = 0 : i64, scratch_operands = 0 : i64, tpu.core_type = #tpu.core_type<tc>, window_params = [{transform_indices = @transform_0, window_bounds = array<i64: 8, 128>}, {pipeline_mode = #tpu.pipeline_mode<synchronous>, transform_indices = @transform_1, window_bounds = array<i64: 128, 512>}, {pipeline_mode = #tpu.pipeline_mode<synchronous>, transform_indices = @transform_2, window_bounds = array<i64: 1, 512>}, {pipeline_mode = #tpu.pipeline_mode<synchronous>, transform_indices = @transform_3, window_bounds = array<i64: 512, 256>}, {pipeline_mode = #tpu.pipeline_mode<synchronous>, transform_indices = @transform_4, window_bounds = array<i64: 1, 256>}, {pipeline_mode = #tpu.pipeline_mode<synchronous>, transform_indices = @transform_5, window_bounds = array<i64: 256, 128>}, {pipeline_mode = #tpu.pipeline_mode<synchronous>, transform_indices = @transform_6, window_bounds = array<i64: 1, 128>}, {transform_indices = @transform_7, window_bounds = array<i64: 8, 128>}]} {
    %c0 = arith.constant 0 : index
    %c0_0 = arith.constant 0 : index
    %0 = vector.load %arg1[%c0, %c0_0] : memref<8x128xf32, #tpu.memory_space<vmem>>, vector<8x128xf32>
    %1 = arith.truncf %0 : vector<8x128xf32> to vector<8x128xbf16>
    %c0_1 = arith.constant 0 : index
    %c0_2 = arith.constant 0 : index
    %2 = vector.load %arg2[%c0_1, %c0_2] : memref<128x512xbf16, #tpu.memory_space<vmem>>, vector<128x512xbf16>
    %cst = arith.constant dense<0.000000e+00> : vector<8x512xf32>
    %3 = tpu.matmul %1, %2, %cst {dimension_numbers = #tpu.dot_dimension_numbers<[1], [0], [0], [1], [0, 0, 1, 1], [], []>} : vector<8x128xbf16>, vector<128x512xbf16>, vector<8x512xf32> -> vector<8x512xf32>
    %c0_3 = arith.constant 0 : index
    %c0_4 = arith.constant 0 : index
    %4 = vector.load %arg3[%c0_3, %c0_4] : memref<1x512xf32, #tpu.memory_space<vmem>>, vector<1x512xf32>
    %5 = vector.broadcast %4 : vector<1x512xf32> to vector<8x512xf32>
    %6 = arith.addf %3, %5 : vector<8x512xf32>
    %cst_5 = arith.constant 0.000000e+00 : f32
    %7 = vector.broadcast %cst_5 : f32 to vector<8x512xf32>
    %8 = arith.maximumf %6, %7 : vector<8x512xf32>
    %9 = arith.truncf %8 : vector<8x512xf32> to vector<8x512xbf16>
    %c0_6 = arith.constant 0 : index
    %c0_7 = arith.constant 0 : index
    %10 = vector.load %arg4[%c0_6, %c0_7] : memref<512x256xbf16, #tpu.memory_space<vmem>>, vector<512x256xbf16>
    %cst_8 = arith.constant dense<0.000000e+00> : vector<8x256xf32>
    %11 = tpu.matmul %9, %10, %cst_8 {dimension_numbers = #tpu.dot_dimension_numbers<[1], [0], [0], [1], [0, 0, 1, 1], [], []>} : vector<8x512xbf16>, vector<512x256xbf16>, vector<8x256xf32> -> vector<8x256xf32>
    %c0_9 = arith.constant 0 : index
    %c0_10 = arith.constant 0 : index
    %12 = vector.load %arg5[%c0_9, %c0_10] : memref<1x256xf32, #tpu.memory_space<vmem>>, vector<1x256xf32>
    %13 = vector.broadcast %12 : vector<1x256xf32> to vector<8x256xf32>
    %14 = arith.addf %11, %13 : vector<8x256xf32>
    %cst_11 = arith.constant 0.000000e+00 : f32
    %15 = vector.broadcast %cst_11 : f32 to vector<8x256xf32>
    %16 = arith.maximumf %14, %15 : vector<8x256xf32>
    %17 = arith.truncf %16 : vector<8x256xf32> to vector<8x256xbf16>
    %c0_12 = arith.constant 0 : index
    %c0_13 = arith.constant 0 : index
    %18 = vector.load %arg6[%c0_12, %c0_13] : memref<256x128xbf16, #tpu.memory_space<vmem>>, vector<256x128xbf16>
    %cst_14 = arith.constant dense<0.000000e+00> : vector<8x128xf32>
    %19 = tpu.matmul %17, %18, %cst_14 {dimension_numbers = #tpu.dot_dimension_numbers<[1], [0], [0], [1], [0, 0, 1, 1], [], []>} : vector<8x256xbf16>, vector<256x128xbf16>, vector<8x128xf32> -> vector<8x128xf32>
    %c0_15 = arith.constant 0 : index
    %c0_16 = arith.constant 0 : index
    %20 = vector.load %arg7[%c0_15, %c0_16] : memref<1x128xf32, #tpu.memory_space<vmem>>, vector<1x128xf32>
    %21 = vector.broadcast %20 : vector<1x128xf32> to vector<8x128xf32>
    %22 = arith.addf %19, %21 : vector<8x128xf32>
    %c0_17 = arith.constant 0 : index
    %c0_18 = arith.constant 0 : index
    %23 = vector.load %arg8[%c0_17, %c0_18] : memref<8x128xf32, #tpu.memory_space<vmem>>, vector<8x128xf32>
    tpu.vector_store %arg8[%c0_17, %c0_18], %22 {strides = array<i32>} : memref<8x128xf32, #tpu.memory_space<vmem>>, vector<8x128xf32>,
    return
  }
  func.func @transform_0(%arg0: i32) -> (i32, i32) {
    %c0_i32 = arith.constant 0 : i32
    %c0_i32_0 = arith.constant 0 : i32
    return %arg0, %c0_i32 : i32, i32
  }
  func.func @transform_1(%arg0: i32) -> (i32, i32) {
    %c0_i32 = arith.constant 0 : i32
    %c0_i32_0 = arith.constant 0 : i32
    %c0_i32_1 = arith.constant 0 : i32
    return %c0_i32, %c0_i32_0 : i32, i32
  }
  func.func @transform_2(%arg0: i32) -> (i32, i32) {
    %c0_i32 = arith.constant 0 : i32
    %c0_i32_0 = arith.constant 0 : i32
    %c0_i32_1 = arith.constant 0 : i32
    return %c0_i32, %c0_i32_0 : i32, i32
  }
  func.func @transform_3(%arg0: i32) -> (i32, i32) {
    %c0_i32 = arith.constant 0 : i32
    %c0_i32_0 = arith.constant 0 : i32
    %c0_i32_1 = arith.constant 0 : i32
    return %c0_i32, %c0_i32_0 : i32, i32
  }
  func.func @transform_4(%arg0: i32) -> (i32, i32) {
    %c0_i32 = arith.constant 0 : i32
    %c0_i32_0 = arith.constant 0 : i32
    %c0_i32_1 = arith.constant 0 : i32
    return %c0_i32, %c0_i32_0 : i32, i32
  }
  func.func @transform_5(%arg0: i32) -> (i32, i32) {
    %c0_i32 = arith.constant 0 : i32
    %c0_i32_0 = arith.constant 0 : i32
    %c0_i32_1 = arith.constant 0 : i32
    return %c0_i32, %c0_i32_0 : i32, i32
  }
  func.func @transform_6(%arg0: i32) -> (i32, i32) {
    %c0_i32 = arith.constant 0 : i32
    %c0_i32_0 = arith.constant 0 : i32
    %c0_i32_1 = arith.constant 0 : i32
    return %c0_i32, %c0_i32_0 : i32, i32
  }
  func.func @transform_7(%arg0: i32) -> (i32, i32) {
    %c0_i32 = arith.constant 0 : i32
    %c0_i32_0 = arith.constant 0 : i32
    return %arg0, %c0_i32 : i32, i32
  }
}

</mosaic_0001>

<llo_original>
// kernel: tpu_custom_call.1
$region0: #{tpu_custom_call.1}
  #allocation0 [shape = 'u32[]', space=smem, size = 0x4, offset = 0x4, fixed_abs, tag = 'smem constant byte address 0x4 - core index']
  #allocation1 [shape = 'u32[144,128]{1,0:T(1,128)}', space=vmem, size = 0x12000, scoped, tag = 'internal scratch']
  %s0 = inlined_call_operand.hbm [shape: f32[8,128], index: 0, kind: input, shape index: {}]
  %s1 = inlined_call_operand.hbm [shape: bf16[128,512], index: 1, kind: input, shape index: {}]
  %s2 = inlined_call_operand.hbm [shape: f32[1,512], index: 2, kind: input, shape index: {}]
  %s3 = inlined_call_operand.hbm [shape: bf16[512,256], index: 3, kind: input, shape index: {}]
  %s4 = inlined_call_operand.vmem [shape: f32[1,256], index: 4, kind: input, shape index: {}]
  %s5 = inlined_call_operand.hbm [shape: bf16[256,128], index: 5, kind: input, shape index: {}]
  %s6 = inlined_call_operand.vmem [shape: f32[1,128], index: 6, kind: input, shape index: {}]
  %s7 = inlined_call_operand.hbm [shape: f32[8,128], index: 7, kind: output, shape index: {}]
  %s8 = sld [smem:[#allocation0]]
  $region58: #{tpu_custom_call.1} parent=0
    _
  %s10 = ssub.s32 1, %s8
  %s11 = scalar_select 0, %s10, %s8
  $region1: #{tpu_custom_call.1} parent=0
    #allocation2 [shape = 'u8[4096]{0}', space=vmem, size = 0x1000, scoped, tag = 'input window, operand 0, single buffered']
    #allocation3 [shape = 's32[1]{0}', space=sflag, size = 0x4, scoped, tag = 'scoped memory for tpu_custom_call.1']
    #allocation4 [shape = 's32[1]{0}', space=sflag, size = 0x4, scoped, tag = 'scoped memory for tpu_custom_call.1']
    #allocation5 [shape = 'u8[131072]{0}', space=vmem, size = 0x20000, scoped, tag = 'input window, operand 1, single buffered']
    #allocation6 [shape = 's32[1]{0}', space=sflag, size = 0x4, scoped, tag = 'scoped memory for tpu_custom_call.1']
    #allocation7 [shape = 'u8[2048]{0}', space=vmem, size = 0x800, scoped, tag = 'input window, operand 2, single buffered']
    #allocation8 [shape = 'u8[262144]{0}', space=vmem, size = 0x40000, scoped, tag = 'input window, operand 3, single buffered']
    #allocation9 [shape = 's32[1]{0}', space=sflag, size = 0x4, scoped, tag = 'scoped memory for tpu_custom_call.1']
    #allocation10 [shape = 'u8[65536]{0}', space=vmem, size = 0x10000, scoped, tag = 'input window, operand 5, single buffered']
    #allocation11 [shape = 'u8[4096]{0}', space=vmem, size = 0x1000, scoped, tag = 'output window, operand 0, single buffered']
    %12 = vsyncpa [#allocation3], 0
    %13 = vsyncpa [#allocation6], 0
    %14 = vsyncpa [#allocation9], 0
    %15 = vsyncpa [#allocation4], 0
    // Predicated region
    $region2: #{tpu_custom_call.1} parent=1 // pred_check
      _
    $region3: #{tpu_custom_call.1} parent=1 // pred_check_branch
      %17 = sbr.rel (0) target = $region5
    $region4: #{tpu_custom_call.1} parent=1 // pred_region
      %s19 = ssub.s32 128, 128
      %20 = vsyncadd [#allocation3], %s19
      %s22 = sshll.u32 [#allocation2], 4
      %s23 = int_to_ptr.vmem [resolvable:$true] %s22
      %25 = dma.hbm_to_vmem [thread:$0]  %s0, 128, %s23, [#allocation3]
    $region5: #{tpu_custom_call.1} parent=1 // pred_fallthru
      _
    // Predicated region
    $region6: #{tpu_custom_call.1} parent=1 // pred_check
      _
    $region7: #{tpu_custom_call.1} parent=1 // pred_check_branch
      %27 = sbr.rel (0) target = $region9
    $region8: #{tpu_custom_call.1} parent=1 // pred_region
      %s29 = ssub.s32 4096, 4096
      %30 = vsyncadd [#allocation6], %s29
      %s31 = sshll.u32 [#allocation5], 4
      %s32 = int_to_ptr.vmem [resolvable:$true] %s31
      %37 = dma.hbm_to_vmem [thread:$0]  %s1, 4096, %s32, [#allocation6], 256, 256, 16
    $region9: #{tpu_custom_call.1} parent=1 // pred_fallthru
      _
    // Predicated region
    $region10: #{tpu_custom_call.1} parent=1 // pred_check
      _
    $region11: #{tpu_custom_call.1} parent=1 // pred_check_branch
      %39 = sbr.rel (0) target = $region13
    $region12: #{tpu_custom_call.1} parent=1 // pred_region
      %s41 = ssub.s32 64, 64
      %42 = vsyncadd [#allocation6], %s41
      %s44 = sshll.u32 [#allocation7], 4
      %s45 = int_to_ptr.vmem [resolvable:$true] %s44
      %47 = dma.hbm_to_vmem [thread:$0]  %s2, 64, %s45, [#allocation6]
    $region13: #{tpu_custom_call.1} parent=1 // pred_fallthru
      _
    // Predicated region
    $region14: #{tpu_custom_call.1} parent=1 // pred_check
      _
    $region15: #{tpu_custom_call.1} parent=1 // pred_check_branch
      %49 = sbr.rel (0) target = $region17
    $region16: #{tpu_custom_call.1} parent=1 // pred_region
      %s51 = ssub.s32 8192, 8192
      %52 = vsyncadd [#allocation9], %s51
      %s53 = sshll.u32 [#allocation8], 4
      %s54 = int_to_ptr.vmem [resolvable:$true] %s53
      %59 = dma.hbm_to_vmem [thread:$0]  %s3, 8192, %s54, [#allocation9], 128, 128, 8
    $region17: #{tpu_custom_call.1} parent=1 // pred_fallthru
      _
    // Predicated region
    $region18: #{tpu_custom_call.1} parent=1 // pred_check
      _
    $region19: #{tpu_custom_call.1} parent=1 // pred_check_branch
      %61 = sbr.rel (0) target = $region21
    $region20: #{tpu_custom_call.1} parent=1 // pred_region
      _
    $region21: #{tpu_custom_call.1} parent=1 // pred_fallthru
      _
    // Predicated region
    $region22: #{tpu_custom_call.1} parent=1 // pred_check
      _
    $region23: #{tpu_custom_call.1} parent=1 // pred_check_branch
      %63 = sbr.rel (0) target = $region25
    $region24: #{tpu_custom_call.1} parent=1 // pred_region
      %s65 = ssub.s32 2048, 2048
      %66 = vsyncadd [#allocation9], %s65
      %s67 = sshll.u32 [#allocation10], 4
      %s68 = int_to_ptr.vmem [resolvable:$true] %s67
      %73 = dma.hbm_to_vmem [thread:$0]  %s5, 2048, %s68, [#allocation9], 64, 64, 4
    $region25: #{tpu_custom_call.1} parent=1 // pred_fallthru
      _
    // Predicated region
    $region26: #{tpu_custom_call.1} parent=1 // pred_check
      _
    $region27: #{tpu_custom_call.1} parent=1 // pred_check_branch
      %75 = sbr.rel (0) target = $region29
    $region28: #{tpu_custom_call.1} parent=1 // pred_region
      _
    $region29: #{tpu_custom_call.1} parent=1 // pred_fallthru
      _
    // Predicated region
    $region30: #{tpu_custom_call.1} parent=1 // pred_check
      _
    $region31: #{tpu_custom_call.1} parent=1 // pred_check_branch
      %77 = sbr.rel (0) target = $region33
    $region32: #{tpu_custom_call.1} parent=1 // pred_region
      %78 = dma.done [#allocation3], 128
    $region33: #{tpu_custom_call.1} parent=1 // pred_fallthru
      _
    // Predicated region
    $region34: #{tpu_custom_call.1} parent=1 // pred_check
      _
    $region35: #{tpu_custom_call.1} parent=1 // pred_check_branch
      %80 = sbr.rel (0) target = $region37
    $region36: #{tpu_custom_call.1} parent=1 // pred_region
      %81 = dma.done [#allocation6], 4096
    $region37: #{tpu_custom_call.1} parent=1 // pred_fallthru
      _
    // Predicated region
    $region38: #{tpu_custom_call.1} parent=1 // pred_check
      _
    $region39: #{tpu_custom_call.1} parent=1 // pred_check_branch
      %83 = sbr.rel (0) target = $region41
    $region40: #{tpu_custom_call.1} parent=1 // pred_region
      %84 = dma.done [#allocation6], 64
    $region41: #{tpu_custom_call.1} parent=1 // pred_fallthru
      _
    // Predicated region
    $region42: #{tpu_custom_call.1} parent=1 // pred_check
      _
    $region43: #{tpu_custom_call.1} parent=1 // pred_check_branch
      %86 = sbr.rel (0) target = $region45
    $region44: #{tpu_custom_call.1} parent=1 // pred_region
      %87 = dma.done [#allocation9], 8192
    $region45: #{tpu_custom_call.1} parent=1 // pred_fallthru
      _
    // Predicated region
    $region46: #{tpu_custom_call.1} parent=1 // pred_check
      _
    $region47: #{tpu_custom_call.1} parent=1 // pred_check_branch
      %89 = sbr.rel (0) target = $region49
    $region48: #{tpu_custom_call.1} parent=1 // pred_region
      %90 = dma.done [#allocation9], 2048
    $region49: #{tpu_custom_call.1} parent=1 // pred_fallthru
      _
    %v92 = vld [vmem:[#allocation2] sm:$0xff]
    %v93 = vpack.c.bf16 %v92, %v92
    %v94 = vld [vmem:[#allocation5] sm:$0xff]
    %v95 = vld [vmem:[#allocation5 + $0x8] sm:$0xff]
    %v96 = vld [vmem:[#allocation5 + $0x10] sm:$0xff]
    %v97 = vld [vmem:[#allocation5 + $0x18] sm:$0xff]
    %v98 = vld [vmem:[#allocation5 + $0x20] sm:$0xff]
    %v99 = vld [vmem:[#allocation5 + $0x28] sm:$0xff]
    %v100 = vld [vmem:[#allocation5 + $0x30] sm:$0xff]
    %v101 = vld [vmem:[#allocation5 + $0x38] sm:$0xff]
    %v102 = vld [vmem:[#allocation5 + $0x40] sm:$0xff]
    %v103 = vld [vmem:[#allocation5 + $0x48] sm:$0xff]
    %v104 = vld [vmem:[#allocation5 + $0x50] sm:$0xff]
    %v105 = vld [vmem:[#allocation5 + $0x58] sm:$0xff]
    %v106 = vld [vmem:[#allocation5 + $0x60] sm:$0xff]
    %v107 = vld [vmem:[#allocation5 + $0x68] sm:$0xff]
    %v108 = vld [vmem:[#allocation5 + $0x70] sm:$0xff]
    %v109 = vld [vmem:[#allocation5 + $0x78] sm:$0xff]
    %v110 = vld [vmem:[#allocation5 + $0x80] sm:$0xff]
    %v111 = vld [vmem:[#allocation5 + $0x88] sm:$0xff]
    %v112 = vld [vmem:[#allocation5 + $0x90] sm:$0xff]
    %v113 = vld [vmem:[#allocation5 + $0x98] sm:$0xff]
    %v114 = vld [vmem:[#allocation5 + $0xa0] sm:$0xff]
    %v115 = vld [vmem:[#allocation5 + $0xa8] sm:$0xff]
    %v116 = vld [vmem:[#allocation5 + $0xb0] sm:$0xff]
    %v117 = vld [vmem:[#allocation5 + $0xb8] sm:$0xff]
    %v118 = vld [vmem:[#allocation5 + $0xc0] sm:$0xff]
    %v119 = vld [vmem:[#allocation5 + $0xc8] sm:$0xff]
    %v120 = vld [vmem:[#allocation5 + $0xd0] sm:$0xff]
    %v121 = vld [vmem:[#allocation5 + $0xd8] sm:$0xff]
    %v122 = vld [vmem:[#allocation5 + $0xe0] sm:$0xff]
    %v123 = vld [vmem:[#allocation5 + $0xe8] sm:$0xff]
    %v124 = vld [vmem:[#allocation5 + $0xf0] sm:$0xff]
    %v125 = vld [vmem:[#allocation5 + $0xf8] sm:$0xff]
    %v126 = vld [vmem:[#allocation7] sm:$0xf]
    %v128 = vlaneseq
    %v129 = vshrl.u32 %v128, 7
    %v130 = vsub.s32 0, %v129
    %v131 = vrot.slane %v126, %v130
    %v132 = vlaneseq
    %v133 = vshrl.u32 %v132, 7
    %v134 = vsub.s32 1, %v133
    %v135 = vrot.slane %v126, %v134
    %v136 = vlaneseq
    %v137 = vshrl.u32 %v136, 7
    %v138 = vsub.s32 2, %v137
    %v139 = vrot.slane %v126, %v138
    %v140 = vlaneseq
    %v141 = vshrl.u32 %v140, 7
    %v142 = vsub.s32 3, %v141
    %v143 = vrot.slane %v126, %v142
    %v180 = vunpack.c.l.b16 %v94
    %v181 = vunpack.c.h.b16 %v94
    %v182 = vunpack.c.l.b16 %v95
    %v183 = vunpack.c.h.b16 %v95
    %v184 = vunpack.c.l.b16 %v96
    %v185 = vunpack.c.h.b16 %v96
    %v186 = vunpack.c.l.b16 %v97
    %v187 = vunpack.c.h.b16 %v97
    %v188 = vunpack.c.l.b16 %v98
    %v189 = vunpack.c.h.b16 %v98
    %v190 = vunpack.c.l.b16 %v99
    %v191 = vunpack.c.h.b16 %v99
    %v192 = vunpack.c.l.b16 %v100
    %v193 = vunpack.c.h.b16 %v100
    %v194 = vunpack.c.l.b16 %v101
    %v195 = vunpack.c.h.b16 %v101
    %v196 = vunpack.c.l.b16 %v102
    %v197 = vunpack.c.h.b16 %v102
    %v198 = vunpack.c.l.b16 %v103
    %v199 = vunpack.c.h.b16 %v103
    %v200 = vunpack.c.l.b16 %v104
    %v201 = vunpack.c.h.b16 %v104
    %v202 = vunpack.c.l.b16 %v105
    %v203 = vunpack.c.h.b16 %v105
    %v204 = vunpack.c.l.b16 %v106
    %v205 = vunpack.c.h.b16 %v106
    %v206 = vunpack.c.l.b16 %v107
    %v207 = vunpack.c.h.b16 %v107
    %v208 = vunpack.c.l.b16 %v108
    %v209 = vunpack.c.h.b16 %v108
    %v210 = vunpack.c.l.b16 %v109
    %v211 = vunpack.c.h.b16 %v109
    %v212 = vunpack.c.l.b16 %v110
    %v213 = vunpack.c.h.b16 %v110
    %v214 = vunpack.c.l.b16 %v111
    %v215 = vunpack.c.h.b16 %v111
    %v216 = vunpack.c.l.b16 %v112
    %v217 = vunpack.c.h.b16 %v112
    %v218 = vunpack.c.l.b16 %v113
    %v219 = vunpack.c.h.b16 %v113
    %v220 = vunpack.c.l.b16 %v114
    %v221 = vunpack.c.h.b16 %v114
    %v222 = vunpack.c.l.b16 %v115
    %v223 = vunpack.c.h.b16 %v115
    %v224 = vunpack.c.l.b16 %v116
    %v225 = vunpack.c.h.b16 %v116
    %v226 = vunpack.c.l.b16 %v117
    %v227 = vunpack.c.h.b16 %v117
    %v228 = vunpack.c.l.b16 %v118
    %v229 = vunpack.c.h.b16 %v118
    %v230 = vunpack.c.l.b16 %v119
    %v231 = vunpack.c.h.b16 %v119
    %v232 = vunpack.c.l.b16 %v120
    %v233 = vunpack.c.h.b16 %v120
    %v234 = vunpack.c.l.b16 %v121
    %v235 = vunpack.c.h.b16 %v121
    %v236 = vunpack.c.l.b16 %v122
    %v237 = vunpack.c.h.b16 %v122
    %v238 = vunpack.c.l.b16 %v123
    %v239 = vunpack.c.h.b16 %v123
    %v240 = vunpack.c.l.b16 %v124
    %v241 = vunpack.c.h.b16 %v124
    %v242 = vunpack.c.l.b16 %v125
    %v243 = vunpack.c.h.b16 %v125
    %v244 = vpack.c.b16 %v184, %v180
    %v245 = vpack.c.b16 %v185, %v181
    %v246 = vpack.c.b16 %v186, %v182
    %v247 = vpack.c.b16 %v187, %v183
    %v248 = vpack.c.b16 %v192, %v188
    %v249 = vpack.c.b16 %v193, %v189
    %v250 = vpack.c.b16 %v194, %v190
    %v251 = vpack.c.b16 %v195, %v191
    %v252 = vpack.c.b16 %v200, %v196
    %v253 = vpack.c.b16 %v201, %v197
    %v254 = vpack.c.b16 %v202, %v198
    %v255 = vpack.c.b16 %v203, %v199
    %v256 = vpack.c.b16 %v208, %v204
    %v257 = vpack.c.b16 %v209, %v205
    %v258 = vpack.c.b16 %v210, %v206
    %v259 = vpack.c.b16 %v211, %v207
    %v260 = vpack.c.b16 %v216, %v212
    %v261 = vpack.c.b16 %v217, %v213
    %v262 = vpack.c.b16 %v218, %v214
    %v263 = vpack.c.b16 %v219, %v215
    %v264 = vpack.c.b16 %v224, %v220
    %v265 = vpack.c.b16 %v225, %v221
    %v266 = vpack.c.b16 %v226, %v222
    %v267 = vpack.c.b16 %v227, %v223
    %v268 = vpack.c.b16 %v232, %v228
    %v269 = vpack.c.b16 %v233, %v229
    %v270 = vpack.c.b16 %v234, %v230
    %v271 = vpack.c.b16 %v235, %v231
    %v272 = vpack.c.b16 %v240, %v236
    %v273 = vpack.c.b16 %v241, %v237
    %v274 = vpack.c.b16 %v242, %v238
    %v275 = vpack.c.b16 %v243, %v239
    %308 = vmatprep.subr.bf16.mxu0 %v273
    %309 = vmatpush1.bf16.msra.mxu0 %v272
    %310 = vmatprep.subr.bf16.mxu0 %v269
    %311 = vmatpush1.bf16.msra.mxu0 %v268
    %312 = vmatprep.subr.bf16.mxu0 %v265
    %313 = vmatpush1.bf16.msra.mxu0 %v264
    %314 = vmatprep.subr.bf16.mxu0 %v261
    %315 = vmatpush1.bf16.msra.mxu0 %v260
    %316 = vmatprep.subr.bf16.mxu0 %v257
    %317 = vmatpush1.bf16.msra.mxu0 %v256
    %318 = vmatprep.subr.bf16.mxu0 %v253
    %319 = vmatpush1.bf16.msra.mxu0 %v252
    %320 = vmatprep.subr.bf16.mxu0 %v249
    %321 = vmatpush1.bf16.msra.mxu0 %v248
    %322 = vmatprep.subr.bf16.mxu0 %v245
    %323 = vmatpush1.bf16.msra.mxu0 %v244
    %324 = vmatprep.subr.bf16.mxu0 0
    %325 = vmatpush2.bf16.msra.mxu0 0
    %326 = vmatprep.subr.bf16.mxu0 0
    %327 = vmatpush2.bf16.msra.mxu0 0
    %328 = vmatprep.subr.bf16.mxu0 0
    %329 = vmatpush2.bf16.msra.mxu0 0
    %330 = vmatprep.subr.bf16.mxu0 0
    %331 = vmatpush2.bf16.msra.mxu0 0
    %332 = vmatprep.subr.bf16.mxu0 0
    %333 = vmatpush2.bf16.msra.mxu0 0
    %334 = vmatprep.subr.bf16.mxu0 0
    %335 = vmatpush2.bf16.msra.mxu0 0
    %336 = vmatprep.subr.bf16.mxu0 0
    %337 = vmatpush2.bf16.msra.mxu0 0
    %338 = vmatprep.subr.bf16.mxu0 0
    %339 = vmatpush2.bf16.msra.mxu0 0
    %340 = vmatprep.mubr.bf16.mxu0 0
    %341 = vmatmul.mubr.bf16.gmra.mxu0 %v93
    %v342 = vpop.f32.mrf.mxu0
    %v343 = vadd.f32 %v131, %v342
    %v344 = vpop.f32.mrf.mxu0
    %v345 = vadd.f32 %v135, %v344
    %v346 = vpop.f32.mrf.mxu0
    %v347 = vpop.f32.mrf.mxu0
    %348 = vdwg.mxu0
    %349 = vmatprep.subr.bf16.mxu0 %v275
    %350 = vmatpush1.bf16.msra.mxu0 %v274
    %351 = vmatprep.subr.bf16.mxu0 %v271
    %352 = vmatpush1.bf16.msra.mxu0 %v270
    %353 = vmatprep.subr.bf16.mxu0 %v267
    %354 = vmatpush1.bf16.msra.mxu0 %v266
    %355 = vmatprep.subr.bf16.mxu0 %v263
    %356 = vmatpush1.bf16.msra.mxu0 %v262
    %357 = vmatprep.subr.bf16.mxu0 %v259
    %358 = vmatpush1.bf16.msra.mxu0 %v258
    %359 = vmatprep.subr.bf16.mxu0 %v255
    %360 = vmatpush1.bf16.msra.mxu0 %v254
    %361 = vmatprep.subr.bf16.mxu0 %v251
    %362 = vmatpush1.bf16.msra.mxu0 %v250
    %363 = vmatprep.subr.bf16.mxu0 %v247
    %364 = vmatpush1.bf16.msra.mxu0 %v246
    %365 = vmatprep.subr.bf16.mxu0 0
    %366 = vmatpush2.bf16.msra.mxu0 0
    %367 = vmatprep.subr.bf16.mxu0 0
    %368 = vmatpush2.bf16.msra.mxu0 0
    %369 = vmatprep.subr.bf16.mxu0 0
    %370 = vmatpush2.bf16.msra.mxu0 0
    %371 = vmatprep.subr.bf16.mxu0 0
    %372 = vmatpush2.bf16.msra.mxu0 0
    %373 = vmatprep.subr.bf16.mxu0 0
    %374 = vmatpush2.bf16.msra.mxu0 0
    %375 = vmatprep.subr.bf16.mxu0 0
    %376 = vmatpush2.bf16.msra.mxu0 0
    %377 = vmatprep.subr.bf16.mxu0 0
    %378 = vmatpush2.bf16.msra.mxu0 0
    %379 = vmatprep.subr.bf16.mxu0 0
    %380 = vmatpush2.bf16.msra.mxu0 0
    %381 = vmatprep.mubr.bf16.mxu0 0
    %382 = vmatmul.mubr.bf16.gmra.mxu0 %v93
    %v383 = vpop.f32.mrf.mxu0
    %v384 = vadd.f32 %v139, %v383
    %v385 = vpop.f32.mrf.mxu0
    %v386 = vadd.f32 %v143, %v385
    %v387 = vpop.f32.mrf.mxu0
    %v388 = vpop.f32.mrf.mxu0
    %389 = vdwg.mxu0
    %v390 = vmax.f32 %v343, 0.0
    %v391 = vmax.f32 %v345, 0.0
    %v392 = vmax.f32 %v384, 0.0
    %v393 = vmax.f32 %v386, 0.0
    %v394 = vpack.c.bf16 %v390, %v390
    %v395 = vpack.c.bf16 %v391, %v391
    %v396 = vpack.c.bf16 %v392, %v392
    %v397 = vpack.c.bf16 %v393, %v393
    %v398 = vld [vmem:[#allocation8] sm:$0xff]
    %v399 = vld [vmem:[#allocation8 + $0x8] sm:$0xff]
    %v400 = vld [vmem:[#allocation8 + $0x10] sm:$0xff]
    %v401 = vld [vmem:[#allocation8 + $0x18] sm:$0xff]
    %v402 = vld [vmem:[#allocation8 + $0x20] sm:$0xff]
    %v403 = vld [vmem:[#allocation8 + $0x28] sm:$0xff]
    %v404 = vld [vmem:[#allocation8 + $0x30] sm:$0xff]
    %v405 = vld [vmem:[#allocation8 + $0x38] sm:$0xff]
    %v406 = vld [vmem:[#allocation8 + $0x40] sm:$0xff]
    %v407 = vld [vmem:[#allocation8 + $0x48] sm:$0xff]
    %v408 = vld [vmem:[#allocation8 + $0x50] sm:$0xff]
    %v409 = vld [vmem:[#allocation8 + $0x58] sm:$0xff]
    %v410 = vld [vmem:[#allocation8 + $0x60] sm:$0xff]
    %v411 = vld [vmem:[#allocation8 + $0x68] sm:$0xff]
    %v412 = vld [vmem:[#allocation8 + $0x70] sm:$0xff]
    %v413 = vld [vmem:[#allocation8 + $0x78] sm:$0xff]
    %v414 = vld [vmem:[#allocation8 + $0x80] sm:$0xff]
    %v415 = vld [vmem:[#allocation8 + $0x88] sm:$0xff]
    %v416 = vld [vmem:[#allocation8 + $0x90] sm:$0xff]
    %v417 = vld [vmem:[#allocation8 + $0x98] sm:$0xff]
    %v418 = vld [vmem:[#allocation8 + $0xa0] sm:$0xff]
    %v419 = vld [vmem:[#allocation8 + $0xa8] sm:$0xff]
    %v420 = vld [vmem:[#allocation8 + $0xb0] sm:$0xff]
    %v421 = vld [vmem:[#allocation8 + $0xb8] sm:$0xff]
    %v422 = vld [vmem:[#allocation8 + $0xc0] sm:$0xff]
    %v423 = vld [vmem:[#allocation8 + $0xc8] sm:$0xff]
    %v424 = vld [vmem:[#allocation8 + $0xd0] sm:$0xff]
    %v425 = vld [vmem:[#allocation8 + $0xd8] sm:$0xff]
    %v426 = vld [vmem:[#allocation8 + $0xe0] sm:$0xff]
    %v427 = vld [vmem:[#allocation8 + $0xe8] sm:$0xff]
    %v428 = vld [vmem:[#allocation8 + $0xf0] sm:$0xff]
    %v429 = vld [vmem:[#allocation8 + $0xf8] sm:$0xff]
    %v430 = vld [vmem:[#allocation8 + $0x100] sm:$0xff]
    %v431 = vld [vmem:[#allocation8 + $0x108] sm:$0xff]
    %v432 = vld [vmem:[#allocation8 + $0x110] sm:$0xff]
    %v433 = vld [vmem:[#allocation8 + $0x118] sm:$0xff]
    %v434 = vld [vmem:[#allocation8 + $0x120] sm:$0xff]
    %v435 = vld [vmem:[#allocation8 + $0x128] sm:$0xff]
    %v436 = vld [vmem:[#allocation8 + $0x130] sm:$0xff]
    %v437 = vld [vmem:[#allocation8 + $0x138] sm:$0xff]
    %v438 = vld [vmem:[#allocation8 + $0x140] sm:$0xff]
    %v439 = vld [vmem:[#allocation8 + $0x148] sm:$0xff]
    %v440 = vld [vmem:[#allocation8 + $0x150] sm:$0xff]
    %v441 = vld [vmem:[#allocation8 + $0x158] sm:$0xff]
    %v442 = vld [vmem:[#allocation8 + $0x160] sm:$0xff]
    %v443 = vld [vmem:[#allocation8 + $0x168] sm:$0xff]
    %v444 = vld [vmem:[#allocation8 + $0x170] sm:$0xff]
    %v445 = vld [vmem:[#allocation8 + $0x178] sm:$0xff]
    %v446 = vld [vmem:[#allocation8 + $0x180] sm:$0xff]
    %v447 = vld [vmem:[#allocation8 + $0x188] sm:$0xff]
    %v448 = vld [vmem:[#allocation8 + $0x190] sm:$0xff]
    %v449 = vld [vmem:[#allocation8 + $0x198] sm:$0xff]
    %v450 = vld [vmem:[#allocation8 + $0x1a0] sm:$0xff]
    %v451 = vld [vmem:[#allocation8 + $0x1a8] sm:$0xff]
    %v452 = vld [vmem:[#allocation8 + $0x1b0] sm:$0xff]
    %v453 = vld [vmem:[#allocation8 + $0x1b8] sm:$0xff]
    %v454 = vld [vmem:[#allocation8 + $0x1c0] sm:$0xff]
    %v455 = vld [vmem:[#allocation8 + $0x1c8] sm:$0xff]
    %v456 = vld [vmem:[#allocation8 + $0x1d0] sm:$0xff]
    %v457 = vld [vmem:[#allocation8 + $0x1d8] sm:$0xff]
    %v458 = vld [vmem:[#allocation8 + $0x1e0] sm:$0xff]
    %v459 = vld [vmem:[#allocation8 + $0x1e8] sm:$0xff]
    %v460 = vld [vmem:[#allocation8 + $0x1f0] sm:$0xff]
    %v461 = vld [vmem:[#allocation8 + $0x1f8] sm:$0xff]
    %v462 = vld [vmem:[%s4] sm:$0x3]
    %v464 = vlaneseq
    %v465 = vshrl.u32 %v464, 7
    %v466 = vsub.s32 0, %v465
    %v467 = vrot.slane %v462, %v466
    %v468 = vlaneseq
    %v469 = vshrl.u32 %v468, 7
    %v470 = vsub.s32 1, %v469
    %v471 = vrot.slane %v462, %v470
    %v538 = vunpack.c.l.b16 %v398
    %v539 = vunpack.c.h.b16 %v398
    %v540 = vunpack.c.l.b16 %v399
    %v541 = vunpack.c.h.b16 %v399
    %v542 = vunpack.c.l.b16 %v400
    %v543 = vunpack.c.h.b16 %v400
    %v544 = vunpack.c.l.b16 %v401
    %v545 = vunpack.c.h.b16 %v401
    %v546 = vunpack.c.l.b16 %v402
    %v547 = vunpack.c.h.b16 %v402
    %v548 = vunpack.c.l.b16 %v403
    %v549 = vunpack.c.h.b16 %v403
    %v550 = vunpack.c.l.b16 %v404
    %v551 = vunpack.c.h.b16 %v404
    %v552 = vunpack.c.l.b16 %v405
    %v553 = vunpack.c.h.b16 %v405
    %v554 = vunpack.c.l.b16 %v406
    %v555 = vunpack.c.h.b16 %v406
    %v556 = vunpack.c.l.b16 %v407
    %v557 = vunpack.c.h.b16 %v407
    %v558 = vunpack.c.l.b16 %v408
    %v559 = vunpack.c.h.b16 %v408
    %v560 = vunpack.c.l.b16 %v409
    %v561 = vunpack.c.h.b16 %v409
    %v562 = vunpack.c.l.b16 %v410
    %v563 = vunpack.c.h.b16 %v410
    %v564 = vunpack.c.l.b16 %v411
    %v565 = vunpack.c.h.b16 %v411
    %v566 = vunpack.c.l.b16 %v412
    %v567 = vunpack.c.h.b16 %v412
    %v568 = vunpack.c.l.b16 %v413
    %v569 = vunpack.c.h.b16 %v413
    %v570 = vunpack.c.l.b16 %v414
    %v571 = vunpack.c.h.b16 %v414
    %v572 = vunpack.c.l.b16 %v415
    %v573 = vunpack.c.h.b16 %v415
    %v574 = vunpack.c.l.b16 %v416
    %v575 = vunpack.c.h.b16 %v416
    %v576 = vunpack.c.l.b16 %v417
    %v577 = vunpack.c.h.b16 %v417
    %v578 = vunpack.c.l.b16 %v418
    %v579 = vunpack.c.h.b16 %v418
    %v580 = vunpack.c.l.b16 %v419
    %v581 = vunpack.c.h.b16 %v419
    %v582 = vunpack.c.l.b16 %v420
    %v583 = vunpack.c.h.b16 %v420
    %v584 = vunpack.c.l.b16 %v421
    %v585 = vunpack.c.h.b16 %v421
    %v586 = vunpack.c.l.b16 %v422
    %v587 = vunpack.c.h.b16 %v422
    %v588 = vunpack.c.l.b16 %v423
    %v589 = vunpack.c.h.b16 %v423
    %v590 = vunpack.c.l.b16 %v424
    %v591 = vunpack.c.h.b16 %v424
    %v592 = vunpack.c.l.b16 %v425
    %v593 = vunpack.c.h.b16 %v425
    %v594 = vunpack.c.l.b16 %v426
    %v595 = vunpack.c.h.b16 %v426
    %v596 = vunpack.c.l.b16 %v427
    %v597 = vunpack.c.h.b16 %v427
    %v598 = vunpack.c.l.b16 %v428
    %v599 = vunpack.c.h.b16 %v428
    %v600 = vunpack.c.l.b16 %v429
    %v601 = vunpack.c.h.b16 %v429
    %v602 = vunpack.c.l.b16 %v430
    %v603 = vunpack.c.h.b16 %v430
    %v604 = vunpack.c.l.b16 %v431
    %v605 = vunpack.c.h.b16 %v431
    %v606 = vunpack.c.l.b16 %v432
    %v607 = vunpack.c.h.b16 %v432
    %v608 = vunpack.c.l.b16 %v433
    %v609 = vunpack.c.h.b16 %v433
    %v610 = vunpack.c.l.b16 %v434
    %v611 = vunpack.c.h.b16 %v434
    %v612 = vunpack.c.l.b16 %v435
    %v613 = vunpack.c.h.b16 %v435
    %v614 = vunpack.c.l.b16 %v436
    %v615 = vunpack.c.h.b16 %v436
    %v616 = vunpack.c.l.b16 %v437
    %v617 = vunpack.c.h.b16 %v437
    %v618 = vunpack.c.l.b16 %v438
    %v619 = vunpack.c.h.b16 %v438
    %v620 = vunpack.c.l.b16 %v439
    %v621 = vunpack.c.h.b16 %v439
    %v622 = vunpack.c.l.b16 %v440
    %v623 = vunpack.c.h.b16 %v440
    %v624 = vunpack.c.l.b16 %v441
    %v625 = vunpack.c.h.b16 %v441
    %v626 = vunpack.c.l.b16 %v442
    %v627 = vunpack.c.h.b16 %v442
    %v628 = vunpack.c.l.b16 %v443
    %v629 = vunpack.c.h.b16 %v443
    %v630 = vunpack.c.l.b16 %v444
    %v631 = vunpack.c.h.b16 %v444
    %v632 = vunpack.c.l.b16 %v445
    %v633 = vunpack.c.h.b16 %v445
    %v634 = vunpack.c.l.b16 %v446
    %v635 = vunpack.c.h.b16 %v446
    %v636 = vunpack.c.l.b16 %v447
    %v637 = vunpack.c.h.b16 %v447
    %v638 = vunpack.c.l.b16 %v448
    %v639 = vunpack.c.h.b16 %v448
    %v640 = vunpack.c.l.b16 %v449
    %v641 = vunpack.c.h.b16 %v449
    %v642 = vunpack.c.l.b16 %v450
    %v643 = vunpack.c.h.b16 %v450
    %v644 = vunpack.c.l.b16 %v451
    %v645 = vunpack.c.h.b16 %v451
    %v646 = vunpack.c.l.b16 %v452
    %v647 = vunpack.c.h.b16 %v452
    %v648 = vunpack.c.l.b16 %v453
    %v649 = vunpack.c.h.b16 %v453
    %v650 = vunpack.c.l.b16 %v454
    %v651 = vunpack.c.h.b16 %v454
    %v652 = vunpack.c.l.b16 %v455
    %v653 = vunpack.c.h.b16 %v455
    %v654 = vunpack.c.l.b16 %v456
    %v655 = vunpack.c.h.b16 %v456
    %v656 = vunpack.c.l.b16 %v457
    %v657 = vunpack.c.h.b16 %v457
    %v658 = vunpack.c.l.b16 %v458
    %v659 = vunpack.c.h.b16 %v458
    %v660 = vunpack.c.l.b16 %v459
    %v661 = vunpack.c.h.b16 %v459
    %v662 = vunpack.c.l.b16 %v460
    %v663 = vunpack.c.h.b16 %v460
    %v664 = vunpack.c.l.b16 %v461
    %v665 = vunpack.c.h.b16 %v461
    %v666 = vpack.c.b16 %v540, %v538
    %v667 = vpack.c.b16 %v541, %v539
    %v668 = vpack.c.b16 %v544, %v542
    %v669 = vpack.c.b16 %v545, %v543
    %v670 = vpack.c.b16 %v548, %v546
    %v671 = vpack.c.b16 %v549, %v547
    %v672 = vpack.c.b16 %v552, %v550
    %v673 = vpack.c.b16 %v553, %v551
    %v674 = vpack.c.b16 %v556, %v554
    %v675 = vpack.c.b16 %v557, %v555
    %v676 = vpack.c.b16 %v560, %v558
    %v677 = vpack.c.b16 %v561, %v559
    %v678 = vpack.c.b16 %v564, %v562
    %v679 = vpack.c.b16 %v565, %v563
    %v680 = vpack.c.b16 %v568, %v566
    %v681 = vpack.c.b16 %v569, %v567
    %v682 = vpack.c.b16 %v572, %v570
    %v683 = vpack.c.b16 %v573, %v571
    %v684 = vpack.c.b16 %v576, %v574
    %v685 = vpack.c.b16 %v577, %v575
    %v686 = vpack.c.b16 %v580, %v578
    %v687 = vpack.c.b16 %v581, %v579
    %v688 = vpack.c.b16 %v584, %v582
    %v689 = vpack.c.b16 %v585, %v583
    %v690 = vpack.c.b16 %v588, %v586
    %v691 = vpack.c.b16 %v589, %v587
    %v692 = vpack.c.b16 %v592, %v590
    %v693 = vpack.c.b16 %v593, %v591
    %v694 = vpack.c.b16 %v596, %v594
    %v695 = vpack.c.b16 %v597, %v595
    %v696 = vpack.c.b16 %v600, %v598
    %v697 = vpack.c.b16 %v601, %v599
    %v698 = vpack.c.b16 %v604, %v602
    %v699 = vpack.c.b16 %v605, %v603
    %v700 = vpack.c.b16 %v608, %v606
    %v701 = vpack.c.b16 %v609, %v607
    %v702 = vpack.c.b16 %v612, %v610
    %v703 = vpack.c.b16 %v613, %v611
    %v704 = vpack.c.b16 %v616, %v614
    %v705 = vpack.c.b16 %v617, %v615
    %v706 = vpack.c.b16 %v620, %v618
    %v707 = vpack.c.b16 %v621, %v619
    %v708 = vpack.c.b16 %v624, %v622
    %v709 = vpack.c.b16 %v625, %v623
    %v710 = vpack.c.b16 %v628, %v626
    %v711 = vpack.c.b16 %v629, %v627
    %v712 = vpack.c.b16 %v632, %v630
    %v713 = vpack.c.b16 %v633, %v631
    %v714 = vpack.c.b16 %v636, %v634
    %v715 = vpack.c.b16 %v637, %v635
    %v716 = vpack.c.b16 %v640, %v638
    %v717 = vpack.c.b16 %v641, %v639
    %v718 = vpack.c.b16 %v644, %v642
    %v719 = vpack.c.b16 %v645, %v643
    %v720 = vpack.c.b16 %v648, %v646
    %v721 = vpack.c.b16 %v649, %v647
    %v722 = vpack.c.b16 %v652, %v650
    %v723 = vpack.c.b16 %v653, %v651
    %v724 = vpack.c.b16 %v656, %v654
    %v725 = vpack.c.b16 %v657, %v655
    %v726 = vpack.c.b16 %v660, %v658
    %v727 = vpack.c.b16 %v661, %v659
    %v728 = vpack.c.b16 %v664, %v662
    %v729 = vpack.c.b16 %v665, %v663
    %794 = vmatprep.subr.bf16.mxu0 %v681
    %795 = vmatpush1.bf16.msra.mxu0 %v680
    %796 = vmatprep.subr.bf16.mxu0 %v679
    %797 = vmatpush1.bf16.msra.mxu0 %v678
    %798 = vmatprep.subr.bf16.mxu0 %v677
    %799 = vmatpush1.bf16.msra.mxu0 %v676
    %800 = vmatprep.subr.bf16.mxu0 %v675
    %801 = vmatpush1.bf16.msra.mxu0 %v674
    %802 = vmatprep.subr.bf16.mxu0 %v673
    %803 = vmatpush1.bf16.msra.mxu0 %v672
    %804 = vmatprep.subr.bf16.mxu0 %v671
    %805 = vmatpush1.bf16.msra.mxu0 %v670
    %806 = vmatprep.subr.bf16.mxu0 %v669
    %807 = vmatpush1.bf16.msra.mxu0 %v668
    %808 = vmatprep.subr.bf16.mxu0 %v667
    %809 = vmatpush1.bf16.msra.mxu0 %v666
    %810 = vmatprep.subr.bf16.mxu0 %v697
    %811 = vmatpush2.bf16.msra.mxu0 %v696
    %812 = vmatprep.subr.bf16.mxu0 %v695
    %813 = vmatpush2.bf16.msra.mxu0 %v694
    %814 = vmatprep.subr.bf16.mxu0 %v693
    %815 = vmatpush2.bf16.msra.mxu0 %v692
    %816 = vmatprep.subr.bf16.mxu0 %v691
    %817 = vmatpush2.bf16.msra.mxu0 %v690
    %818 = vmatprep.subr.bf16.mxu0 %v689
    %819 = vmatpush2.bf16.msra.mxu0 %v688
    %820 = vmatprep.subr.bf16.mxu0 %v687
    %821 = vmatpush2.bf16.msra.mxu0 %v686
    %822 = vmatprep.subr.bf16.mxu0 %v685
    %823 = vmatpush2.bf16.msra.mxu0 %v684
    %824 = vmatprep.subr.bf16.mxu0 %v683
    %825 = vmatpush2.bf16.msra.mxu0 %v682
    %826 = vmatprep.mubr.bf16.mxu0 %v395
    %827 = vmatmul.mubr.bf16.gmra.mxu0 %v394
    %v828 = vpop.f32.mrf.mxu0
    %v829 = vadd.f32 %v467, %v828
    %v830 = vpop.f32.mrf.mxu0
    %v831 = vadd.f32 %v471, %v830
    %v832 = vpop.f32.mrf.mxu0
    %v833 = vpop.f32.mrf.mxu0
    %834 = vdwg.mxu0
    %835 = vmatprep.subr.bf16.mxu0 %v713
    %836 = vmatpush1.bf16.msra.mxu0 %v712
    %837 = vmatprep.subr.bf16.mxu0 %v711
    %838 = vmatpush1.bf16.msra.mxu0 %v710
    %839 = vmatprep.subr.bf16.mxu0 %v709
    %840 = vmatpush1.bf16.msra.mxu0 %v708
    %841 = vmatprep.subr.bf16.mxu0 %v707
    %842 = vmatpush1.bf16.msra.mxu0 %v706
    %843 = vmatprep.subr.bf16.mxu0 %v705
    %844 = vmatpush1.bf16.msra.mxu0 %v704
    %845 = vmatprep.subr.bf16.mxu0 %v703
    %846 = vmatpush1.bf16.msra.mxu0 %v702
    %847 = vmatprep.subr.bf16.mxu0 %v701
    %848 = vmatpush1.bf16.msra.mxu0 %v700
    %849 = vmatprep.subr.bf16.mxu0 %v699
    %850 = vmatpush1.bf16.msra.mxu0 %v698
    %851 = vmatprep.subr.bf16.mxu0 %v729
    %852 = vmatpush2.bf16.msra.mxu0 %v728
    %853 = vmatprep.subr.bf16.mxu0 %v727
    %854 = vmatpush2.bf16.msra.mxu0 %v726
    %855 = vmatprep.subr.bf16.mxu0 %v725
    %856 = vmatpush2.bf16.msra.mxu0 %v724
    %857 = vmatprep.subr.bf16.mxu0 %v723
    %858 = vmatpush2.bf16.msra.mxu0 %v722
    %859 = vmatprep.subr.bf16.mxu0 %v721
    %860 = vmatpush2.bf16.msra.mxu0 %v720
    %861 = vmatprep.subr.bf16.mxu0 %v719
    %862 = vmatpush2.bf16.msra.mxu0 %v718
    %863 = vmatprep.subr.bf16.mxu0 %v717
    %864 = vmatpush2.bf16.msra.mxu0 %v716
    %865 = vmatprep.subr.bf16.mxu0 %v715
    %866 = vmatpush2.bf16.msra.mxu0 %v714
    %867 = vmatprep.mubr.bf16.mxu0 %v397
    %868 = vmatmul.mubr.bf16.gmra.mxu0 %v396
    %v869 = vpop.f32.mrf.mxu0
    %v870 = vadd.f32 %v829, %v869
    %v871 = vpop.f32.mrf.mxu0
    %v872 = vadd.f32 %v831, %v871
    %v873 = vpop.f32.mrf.mxu0
    %v874 = vpop.f32.mrf.mxu0
    %875 = vdwg.mxu0
    %v876 = vmax.f32 %v870, 0.0
    %v877 = vmax.f32 %v872, 0.0
    %v878 = vpack.c.bf16 %v876, %v876
    %v879 = vpack.c.bf16 %v877, %v877
    %v880 = vld [vmem:[#allocation10] sm:$0xf]
    %v881 = vld [vmem:[#allocation10 + $0x4] sm:$0xf]
    %v882 = vld [vmem:[#allocation10 + $0x8] sm:$0xf]
    %v883 = vld [vmem:[#allocation10 + $0xc] sm:$0xf]
    %v884 = vld [vmem:[#allocation10 + $0x10] sm:$0xf]
    %v885 = vld [vmem:[#allocation10 + $0x14] sm:$0xf]
    %v886 = vld [vmem:[#allocation10 + $0x18] sm:$0xf]
    %v887 = vld [vmem:[#allocation10 + $0x1c] sm:$0xf]
    %v888 = vld [vmem:[#allocation10 + $0x20] sm:$0xf]
    %v889 = vld [vmem:[#allocation10 + $0x24] sm:$0xf]
    %v890 = vld [vmem:[#allocation10 + $0x28] sm:$0xf]
    %v891 = vld [vmem:[#allocation10 + $0x2c] sm:$0xf]
    %v892 = vld [vmem:[#allocation10 + $0x30] sm:$0xf]
    %v893 = vld [vmem:[#allocation10 + $0x34] sm:$0xf]
    %v894 = vld [vmem:[#allocation10 + $0x38] sm:$0xf]
    %v895 = vld [vmem:[#allocation10 + $0x3c] sm:$0xf]
    %v896 = vld [vmem:[#allocation10 + $0x40] sm:$0xf]
    %v897 = vld [vmem:[#allocation10 + $0x44] sm:$0xf]
    %v898 = vld [vmem:[#allocation10 + $0x48] sm:$0xf]
    %v899 = vld [vmem:[#allocation10 + $0x4c] sm:$0xf]
    %v900 = vld [vmem:[#allocation10 + $0x50] sm:$0xf]
    %v901 = vld [vmem:[#allocation10 + $0x54] sm:$0xf]
    %v902 = vld [vmem:[#allocation10 + $0x58] sm:$0xf]
    %v903 = vld [vmem:[#allocation10 + $0x5c] sm:$0xf]
    %v904 = vld [vmem:[#allocation10 + $0x60] sm:$0xf]
    %v905 = vld [vmem:[#allocation10 + $0x64] sm:$0xf]
    %v906 = vld [vmem:[#allocation10 + $0x68] sm:$0xf]
    %v907 = vld [vmem:[#allocation10 + $0x6c] sm:$0xf]
    %v908 = vld [vmem:[#allocation10 + $0x70] sm:$0xf]
    %v909 = vld [vmem:[#allocation10 + $0x74] sm:$0xf]
    %v910 = vld [vmem:[#allocation10 + $0x78] sm:$0xf]
    %v911 = vld [vmem:[#allocation10 + $0x7c] sm:$0xf]
    %v912 = vld [vmem:[%s6] sm:$0x1]
    %v914 = vlaneseq
    %v915 = vshrl.u32 %v914, 7
    %v916 = vsub.s32 0, %v915
    %v917 = vrot.slane %v912, %v916
    %v951 = vunpack.c.l.b16 %v880
    %v952 = vunpack.c.l.b16 %v881
    %v953 = vunpack.c.l.b16 %v882
    %v954 = vunpack.c.l.b16 %v883
    %v955 = vunpack.c.l.b16 %v884
    %v956 = vunpack.c.l.b16 %v885
    %v957 = vunpack.c.l.b16 %v886
    %v958 = vunpack.c.l.b16 %v887
    %v959 = vunpack.c.l.b16 %v888
    %v960 = vunpack.c.l.b16 %v889
    %v961 = vunpack.c.l.b16 %v890
    %v962 = vunpack.c.l.b16 %v891
    %v963 = vunpack.c.l.b16 %v892
    %v964 = vunpack.c.l.b16 %v893
    %v965 = vunpack.c.l.b16 %v894
    %v966 = vunpack.c.l.b16 %v895
    %v967 = vunpack.c.l.b16 %v896
    %v968 = vunpack.c.l.b16 %v897
    %v969 = vunpack.c.l.b16 %v898
    %v970 = vunpack.c.l.b16 %v899
    %v971 = vunpack.c.l.b16 %v900
    %v972 = vunpack.c.l.b16 %v901
    %v973 = vunpack.c.l.b16 %v902
    %v974 = vunpack.c.l.b16 %v903
    %v975 = vunpack.c.l.b16 %v904
    %v976 = vunpack.c.l.b16 %v905
    %v977 = vunpack.c.l.b16 %v906
    %v978 = vunpack.c.l.b16 %v907
    %v979 = vunpack.c.l.b16 %v908
    %v980 = vunpack.c.l.b16 %v909
    %v981 = vunpack.c.l.b16 %v910
    %v982 = vunpack.c.l.b16 %v911
    %v983 = vpack.c.b16 %v952, %v951
    %v984 = vpack.c.b16 %v954, %v953
    %v985 = vpack.c.b16 %v956, %v955
    %v986 = vpack.c.b16 %v958, %v957
    %v987 = vpack.c.b16 %v960, %v959
    %v988 = vpack.c.b16 %v962, %v961
    %v989 = vpack.c.b16 %v964, %v963
    %v990 = vpack.c.b16 %v966, %v965
    %v991 = vpack.c.b16 %v968, %v967
    %v992 = vpack.c.b16 %v970, %v969
    %v993 = vpack.c.b16 %v972, %v971
    %v994 = vpack.c.b16 %v974, %v973
    %v995 = vpack.c.b16 %v976, %v975
    %v996 = vpack.c.b16 %v978, %v977
    %v997 = vpack.c.b16 %v980, %v979
    %v998 = vpack.c.b16 %v982, %v981
    %1015 = vmatprep.subr.bf16.mxu0 0
    %1016 = vmatpush1.bf16.msra.mxu0 %v990
    %1017 = vmatprep.subr.bf16.mxu0 0
    %1018 = vmatpush1.bf16.msra.mxu0 %v989
    %1019 = vmatprep.subr.bf16.mxu0 0
    %1020 = vmatpush1.bf16.msra.mxu0 %v988
    %1021 = vmatprep.subr.bf16.mxu0 0
    %1022 = vmatpush1.bf16.msra.mxu0 %v987
    %1023 = vmatprep.subr.bf16.mxu0 0
    %1024 = vmatpush1.bf16.msra.mxu0 %v986
    %1025 = vmatprep.subr.bf16.mxu0 0
    %1026 = vmatpush1.bf16.msra.mxu0 %v985
    %1027 = vmatprep.subr.bf16.mxu0 0
    %1028 = vmatpush1.bf16.msra.mxu0 %v984
    %1029 = vmatprep.subr.bf16.mxu0 0
    %1030 = vmatpush1.bf16.msra.mxu0 %v983
    %1031 = vmatprep.subr.bf16.mxu0 0
    %1032 = vmatpush2.bf16.msra.mxu0 %v998
    %1033 = vmatprep.subr.bf16.mxu0 0
    %1034 = vmatpush2.bf16.msra.mxu0 %v997
    %1035 = vmatprep.subr.bf16.mxu0 0
    %1036 = vmatpush2.bf16.msra.mxu0 %v996
    %1037 = vmatprep.subr.bf16.mxu0 0
    %1038 = vmatpush2.bf16.msra.mxu0 %v995
    %1039 = vmatprep.subr.bf16.mxu0 0
    %1040 = vmatpush2.bf16.msra.mxu0 %v994
    %1041 = vmatprep.subr.bf16.mxu0 0
    %1042 = vmatpush2.bf16.msra.mxu0 %v993
    %1043 = vmatprep.subr.bf16.mxu0 0
    %1044 = vmatpush2.bf16.msra.mxu0 %v992
    %1045 = vmatprep.subr.bf16.mxu0 0
    %1046 = vmatpush2.bf16.msra.mxu0 %v991
    %1047 = vmatprep.mubr.bf16.mxu0 %v879
    %1048 = vmatmul.mubr.bf16.gmra.mxu0 %v878
    %v1049 = vpop.f32.mrf.mxu0
    %v1050 = vadd.f32 %v917, %v1049
    %v1051 = vpop.f32.mrf.mxu0
    %v1052 = vpop.f32.mrf.mxu0
    %v1053 = vpop.f32.mrf.mxu0
    %1054 = vdwg.mxu0
    %1055 = vst [vmem:[#allocation11] sm:$0xff] %v1050
    // Predicated region
    $region50: #{tpu_custom_call.1} parent=1 // pred_check
      _
    $region51: #{tpu_custom_call.1} parent=1 // pred_check_branch
      %1057 = sbr.rel (0) target = $region53
    $region52: #{tpu_custom_call.1} parent=1 // pred_region
      %s1059 = ssub.s32 128, 128
      %1060 = vsyncadd [#allocation4], %s1059
      %s1062 = sshll.u32 [#allocation11], 4
      %s1063 = int_to_ptr.vmem [resolvable:$true] %s1062
      %1065 = dma.vmem_to_hbm [thread:$0]  %s1063, 128, %s7, [#allocation4]
    $region53: #{tpu_custom_call.1} parent=1 // pred_fallthru
      _
    // Predicated region
    $region54: #{tpu_custom_call.1} parent=1 // pred_check
      _
    $region55: #{tpu_custom_call.1} parent=1 // pred_check_branch
      %1067 = sbr.rel (0) target = $region57
    $region56: #{tpu_custom_call.1} parent=1 // pred_region
      %1068 = dma.done [#allocation4], 128
    $region57: #{tpu_custom_call.1} parent=1 // pred_fallthru
      _
    %1069 = vsyncpa [#allocation3], 1
    %1070 = vsyncpa [#allocation6], 1
    %1071 = vsyncpa [#allocation9], 1
    %1072 = vsyncpa [#allocation4], 1

</llo_original>
